<compile_context>
chip_gen: v6e
topology: v6e:2x2x1
jax: 0.10.0
libtpu: 0.0.40
codegen_flags: <defaults>
</compile_context>

<pallas_src>
import functools

import jax
import jax.numpy as jnp
from jax import lax
from jax.experimental import pallas as pl
from jax.experimental.pallas import tpu as pltpu


HALO = 8  # sublane-aligned number of halo rows fetched on each side of a tile


def _round_up(x, m):
    return ((x + m - 1) // m) * m


# ----------------------------- Pallas kernel ------------------------------- #

def conv1d_kernel(x_main_ref, x_prev_ref, x_next_ref, w_ref, o_ref,
                  ext_ref, acc_ref, *, kernel_size, padding, tile_t, seq_len):
    """Conv1d (stride=1, dilation=1) for one (batch, time-tile) grid point.

    x_main_ref : (1, tile_t, C_in) bf16 -- dense_x rows [t*tile_t, (t+1)*tile_t)
    x_prev_ref : (1, HALO,  C_in) bf16  -- 8 rows just before the tile (clamped)
    x_next_ref : (1, HALO,  C_in) bf16  -- 8 rows just after  the tile (clamped)
    w_ref      : (K, C_in, C_out_pad) bf16
    o_ref      : (1, tile_t, C_out_pad)
    ext_ref    : (HALO + tile_t + HALO, C_in) bf16 VMEM scratch
    acc_ref    : (tile_t, C_out_pad) f32 VMEM scratch accumulator
    """
    t = pl.program_id(1)
    base = t * tile_t  # global time index of the tile's first output row

    # Edge tiles (left sequence edge, right edge incl. ragged / over-the-end
    # output tiles) need global-row zero masking; interior tiles take the
    # cheap unmasked copy path.
    interior = (t > 0) & (base + tile_t + HALO <= seq_len)

    @pl.when(interior)
    def _():
        # All rows in [base - HALO, base + tile_t + HALO) are valid: plain copy.
        ext_ref[pl.ds(0, HALO), :] = x_prev_ref[0]
        ext_ref[pl.ds(HALO, tile_t), :] = x_main_ref[0]
        ext_ref[pl.ds(HALO + tile_t, HALO), :] = x_next_ref[0]

    @pl.when(jnp.logical_not(interior))
    def _():
        def masked_rows(src_ref, start_row, n):
            # Zero rows whose global index falls outside [0, seq_len): this both
            # implements the convolution's zero padding and neutralizes clamped /
            # ragged fetches at the array edges.
            rows = start_row + lax.broadcasted_iota(jnp.int32, (n, 1), 0)
            ok = (rows >= 0) & (rows < seq_len)
            return jnp.where(ok, src_ref[0], 0).astype(ext_ref.dtype)

        ext_ref[pl.ds(0, HALO), :] = masked_rows(x_prev_ref, base - HALO, HALO)
        ext_ref[pl.ds(HALO, tile_t), :] = masked_rows(x_main_ref, base, tile_t)
        ext_ref[pl.ds(HALO + tile_t, HALO), :] = masked_rows(
            x_next_ref, base + tile_t, HALO)

    # K shifted MXU matmuls, f32 accumulation in VMEM (keeps the big
    # accumulator out of vregs).  Output row r, tap k needs x row
    # base + r + k - padding  ->  ext row r + (HALO - padding + k).
    off0 = HALO - padding
    acc_ref[...] = jnp.dot(ext_ref[pl.ds(off0, tile_t), :], w_ref[0],
                           preferred_element_type=jnp.float32)
    for k in range(1, kernel_size):  # K is small & static -> unrolled
        acc_ref[...] += jnp.dot(ext_ref[pl.ds(off0 + k, tile_t), :], w_ref[k],
                                preferred_element_type=jnp.float32)
    o_ref[0] = acc_ref[...].astype(o_ref.dtype)


# ------------------------------- Wrapper ----------------------------------- #

def generator_forward(dense_x, tokens, dense_padding_mask, weight,
                      *, kernel_size=4, stride=1, padding=2, tile_t=512,
                      compute_dtype=jnp.bfloat16, out_dtype=None,
                      return_padded_channels=False):
    """Mirrors Generator.forward for the default config.

    dense_x:            (B, T, C_in)  float32 (or bf16)
    tokens:             (B, S) int    (or None)
    dense_padding_mask: (B, T) bool
    weight:             (K, C_in, C_out)  (== PyTorch (C_out, C_in, K) transposed)
    """
    assert stride == 1  # TODO(synk): stride>1 path (mask subsampling) unused by the default config
    # TODO(synk): batch_norm / residual / dropout branches are disabled by the default config.

    B, T, C_in = dense_x.shape
    K, _, C_out = weight.shape
    assert K == kernel_size
    assert 0 <= padding <= HALO and (kernel_size - 1 - padding) <= HALO

    out_dtype = dense_x.dtype if out_dtype is None else out_dtype
    T_out = T + 2 * padding - (kernel_size - 1)  # stride=1, dilation=1

    # bf16 MXU operands, f32 accumulate.  NOTE: ideally the upstream producer
    # emits bf16 so this cast fuses instead of being a standalone pass.
    x = dense_x if dense_x.dtype == compute_dtype else dense_x.astype(compute_dtype)

    # Tile the time axis (multiple of 8, capped so a main block never exceeds T).
    tile_t = min(tile_t, _round_up(T_out, 8))
    if T >= 8:
        tile_t = min(tile_t, (T // 8) * 8)
    tile_t = max(tile_t, 8)
    nt = pl.cdiv(T_out, tile_t)
    tpb = tile_t // HALO                      # 8-row blocks per time tile

    # Lane-dense output: pad C_out to a multiple of 128 (zero cols) only when
    # needed; slice back in the wrapper unless the caller consumes the padded
    # layout directly.
    c_out_pad = _round_up(C_out, 128)
    w = weight
    if c_out_pad != C_out:
        w = jnp.pad(w, ((0, 0), (0, 0), (0, c_out_pad - C_out)))
    w = w.astype(compute_dtype)

    max_main_blk = pl.cdiv(T, tile_t) - 1     # clamp for ragged/over-the-end tiles
    max_halo_blk = pl.cdiv(T, HALO) - 1

    kernel = functools.partial(conv1d_kernel, kernel_size=kernel_size,
                               padding=padding, tile_t=tile_t, seq_len=T)

    dense_out = pl.pallas_call(
        kernel,
        out_shape=jax.ShapeDtypeStruct((B, T_out, c_out_pad), out_dtype),
        grid_spec=pltpu.PrefetchScalarGridSpec(
            num_scalar_prefetch=0,
            grid=(B, nt),
            in_specs=[
                # main tile, read directly from unpadded bf16 dense_x in HBM
                pl.BlockSpec((1, tile_t, C_in),
                             lambda b, t: (b, jnp.minimum(t, max_main_blk), 0)),
                # 8-row halo before the tile (clamped at the left edge)
                pl.BlockSpec((1, HALO, C_in),
                             lambda b, t: (b, jnp.maximum(t * tpb - 1, 0), 0)),
                # 8-row halo after the tile (clamped at the right edge)
                pl.BlockSpec((1, HALO, C_in),
                             lambda b, t: (b, jnp.minimum((t + 1) * tpb,
                                                          max_halo_blk), 0)),
                # grid-invariant conv weight
                pl.BlockSpec((K, C_in, c_out_pad), lambda b, t: (0, 0, 0)),
            ],
            out_specs=pl.BlockSpec((1, tile_t, c_out_pad),
                                   lambda b, t: (b, t, 0)),
            scratch_shapes=[
                pltpu.VMEM((2 * HALO + tile_t, C_in), compute_dtype),
                pltpu.VMEM((tile_t, c_out_pad), jnp.float32),
            ],
        ),
        compiler_params=pltpu.CompilerParams(
            dimension_semantics=("parallel", "parallel"),
            # ~3-12 MiB actually used even at tile_t=512; explicit cap keeps
            # the same config safe on v5e/v6e/v7x scoped-VMEM defaults.
            vmem_limit_bytes=32 * 1024 * 1024,
        ),
    )(x, x, x, w)

    if c_out_pad != C_out and not return_padded_channels:
        # Padded channels are written as zeros; under jit this slice fuses into
        # the consumer.  Callers that can consume the padded layout should pass
        # return_padded_channels=True to skip it entirely.
        dense_out = dense_out[..., :C_out]

    # --- padding-mask length adjustment (same logic as the PyTorch module) ---
    mask = dense_padding_mask
    if stride > 1:
        mask = mask[:, ::stride]
    if mask.shape[1] != dense_out.shape[1]:
        diff = dense_out.shape[1] - mask.shape[1]
        if diff > 0:
            new_mask = jnp.zeros((B, dense_out.shape[1]), dtype=mask.dtype)
            mask = new_mask.at[:, diff:].set(mask)
        else:
            mask = mask[:, :diff]

    # --- token one-hot (scatter_ emulation); plain XLA, fuses into consumer ---
    token_x = None
    if tokens is not None:
        token_x = jax.nn.one_hot(tokens, C_out, dtype=dense_out.dtype)

    return {"dense_x": dense_out,
            "token_x": token_x,
            "dense_padding_mask": mask}


# --------------------------------- Main ------------------------------------ #

if __name__ == "__main__":
    key = jax.random.PRNGKey(0)
    B, T, C_in, C_out, S, K = 2, 16, 32, 64, 8, 4
    PAD = K // 2

    k1, k2, k3 = jax.random.split(key, 3)
    dense_x = jax.random.normal(k1, (B, T, C_in), jnp.float32)
    tokens = jax.random.randint(k2, (B, S), 0, C_out)
    dense_padding_mask = jnp.zeros((B, T), dtype=bool).at[:, T - 3:].set(True)

    # PyTorch conv weight layout (C_out, C_in, K) -> ours (K, C_in, C_out)
    w_pt = jax.random.normal(k3, (C_out, C_in, K), jnp.float32) / jnp.sqrt(C_in * K)
    weight = jnp.transpose(w_pt, (2, 1, 0))

    result = generator_forward(dense_x, tokens, dense_padding_mask, weight,
                               kernel_size=K, stride=1, padding=PAD)
    jax.block_until_ready(result)

    # --- reference check (plain JAX; operands bf16-rounded like the kernel) ---
    T_out = T + 2 * PAD - (K - 1)
    x_bf = dense_x.astype(jnp.bfloat16).astype(jnp.float32)
    w_bf = weight.astype(jnp.bfloat16).astype(jnp.float32)
    x_pad = jnp.pad(x_bf, ((0, 0), (PAD, PAD), (0, 0)))
    ref = jnp.zeros((B, T_out, C_out), jnp.float32)
    for k in range(K):
        ref = ref + jnp.einsum("btc,co->bto", x_pad[:, k:k + T_out, :], w_bf[k],
                               precision=lax.Precision.HIGHEST)
    assert result["dense_x"].shape == (B, T_out, C_out)
    assert jnp.allclose(result["dense_x"], ref, atol=1e-3, rtol=1e-3)
    assert jnp.allclose(result["token_x"],
                        jax.nn.one_hot(tokens, C_out, dtype=jnp.float32))
    assert result["dense_padding_mask"].shape == (B, T_out)
    assert bool(jnp.all(result["dense_padding_mask"][:, 1:] == dense_padding_mask))
    assert bool(jnp.all(~result["dense_padding_mask"][:, 0]))

    print("KERNEL_OK")
</pallas_src>

<mosaic_0001>
module attributes {stable_mosaic.version = 11 : i64} {
  func.func @conv1d_kernel(%arg0: i32, %arg1: i32, %arg2: memref<1x16x32xbf16, #tpu.memory_space<vmem>>, %arg3: memref<1x8x32xbf16, #tpu.memory_space<vmem>>, %arg4: memref<1x8x32xbf16, #tpu.memory_space<vmem>>, %arg5: memref<4x32x128xbf16, #tpu.memory_space<vmem>>, %arg6: memref<1x16x128xf32, #tpu.memory_space<vmem>>, %arg7: memref<32x32xbf16, #tpu.memory_space<vmem>>, %arg8: memref<16x128xf32, #tpu.memory_space<vmem>>) attributes {dimension_semantics = [#tpu.dimension_semantics<parallel>, #tpu.dimension_semantics<parallel>], iteration_bounds = array<i64: 2, 2>, scalar_prefetch = 0 : i64, scratch_operands = 2 : i64, tpu.core_type = #tpu.core_type<tc>, window_params = [{transform_indices = @transform_0, window_bounds = array<i64: 1, 16, 32>}, {transform_indices = @transform_1, window_bounds = array<i64: 1, 8, 32>}, {transform_indices = @transform_2, window_bounds = array<i64: 1, 8, 32>}, {pipeline_mode = #tpu.pipeline_mode<synchronous>, transform_indices = @transform_3, window_bounds = array<i64: 4, 32, 128>}, {transform_indices = @transform_4, window_bounds = array<i64: 1, 16, 128>}]} {
    %c16_i32 = arith.constant 16 : i32
    %0 = arith.muli %arg1, %c16_i32 : i32
    %c0_i32 = arith.constant 0 : i32
    %1 = arith.cmpi sgt, %arg1, %c0_i32 : i32
    %c16_i32_0 = arith.constant 16 : i32
    %2 = arith.addi %0, %c16_i32_0 : i32
    %c8_i32 = arith.constant 8 : i32
    %3 = arith.addi %2, %c8_i32 : i32
    %c16_i32_1 = arith.constant 16 : i32
    %4 = arith.cmpi sle, %3, %c16_i32_1 : i32
    %5 = arith.andi %1, %4 : i1
    %6 = arith.extui %5 : i1 to i32
    %c0_i32_2 = arith.constant 0 : i32
    %7 = arith.cmpi ne, %6, %c0_i32_2 : i32
    scf.if %7 {
      %c0_38 = arith.constant 0 : index
      %c0_39 = arith.constant 0 : index
      %c0_40 = arith.constant 0 : index
      %41 = vector.load %arg3[%c0_38, %c0_39, %c0_40] : memref<1x8x32xbf16, #tpu.memory_space<vmem>>, vector<1x8x32xbf16>
      %42 = vector.shape_cast %41 : vector<1x8x32xbf16> to vector<8x32xbf16>
      %c0_41 = arith.constant 0 : index
      %c0_42 = arith.constant 0 : index
      %43 = vector.load %arg7[%c0_41, %c0_42] : memref<32x32xbf16, #tpu.memory_space<vmem>>, vector<8x32xbf16>
      tpu.vector_store %arg7[%c0_41, %c0_42], %42 {strides = array<i32>} : memref<32x32xbf16, #tpu.memory_space<vmem>>, vector<8x32xbf16>,
      %c0_43 = arith.constant 0 : index
      %c0_44 = arith.constant 0 : index
      %c0_45 = arith.constant 0 : index
      %44 = vector.load %arg2[%c0_43, %c0_44, %c0_45] : memref<1x16x32xbf16, #tpu.memory_space<vmem>>, vector<1x16x32xbf16>
      %45 = vector.shape_cast %44 : vector<1x16x32xbf16> to vector<16x32xbf16>
      %c8_46 = arith.constant 8 : index
      %c0_47 = arith.constant 0 : index
      %46 = vector.load %arg7[%c8_46, %c0_47] : memref<32x32xbf16, #tpu.memory_space<vmem>>, vector<16x32xbf16>
      tpu.vector_store %arg7[%c8_46, %c0_47], %45 {strides = array<i32>} : memref<32x32xbf16, #tpu.memory_space<vmem>>, vector<16x32xbf16>,
      %c0_48 = arith.constant 0 : index
      %c0_49 = arith.constant 0 : index
      %c0_50 = arith.constant 0 : index
      %47 = vector.load %arg4[%c0_48, %c0_49, %c0_50] : memref<1x8x32xbf16, #tpu.memory_space<vmem>>, vector<1x8x32xbf16>
      %48 = vector.shape_cast %47 : vector<1x8x32xbf16> to vector<8x32xbf16>
      %c24 = arith.constant 24 : index
      %c0_51 = arith.constant 0 : index
      %49 = vector.load %arg7[%c24, %c0_51] : memref<32x32xbf16, #tpu.memory_space<vmem>>, vector<8x32xbf16>
      tpu.vector_store %arg7[%c24, %c0_51], %48 {strides = array<i32>} : memref<32x32xbf16, #tpu.memory_space<vmem>>, vector<8x32xbf16>,
    } else {
    }
    %true = arith.constant true
    %8 = arith.xori %5, %true : i1
    %9 = arith.extui %8 : i1 to i32
    %c0_i32_3 = arith.constant 0 : i32
    %10 = arith.cmpi ne, %9, %c0_i32_3 : i32
    scf.if %10 {
      %c8_i32_38 = arith.constant 8 : i32
      %41 = arith.subi %0, %c8_i32_38 : i32
      %42 = tpu.iota {dimensions = array<i32: 0>} : vector<8x1xi32>
      %43 = vector.broadcast %41 : i32 to vector<8x1xi32>
      %44 = arith.addi %43, %42 : vector<8x1xi32>
      %c0_i32_39 = arith.constant 0 : i32
      %45 = vector.broadcast %c0_i32_39 : i32 to vector<8x1xi32>
      %46 = arith.cmpi sge, %44, %45 : vector<8x1xi32>
      %c16_i32_40 = arith.constant 16 : i32
      %47 = vector.broadcast %c16_i32_40 : i32 to vector<8x1xi32>
      %48 = arith.cmpi slt, %44, %47 : vector<8x1xi32>
      %49 = arith.andi %46, %48 : vector<8x1xi1>
      %c0_41 = arith.constant 0 : index
      %c0_42 = arith.constant 0 : index
      %c0_43 = arith.constant 0 : index
      %50 = vector.load %arg3[%c0_41, %c0_42, %c0_43] : memref<1x8x32xbf16, #tpu.memory_space<vmem>>, vector<1x8x32xbf16>
      %51 = vector.shape_cast %50 : vector<1x8x32xbf16> to vector<8x32xbf16>
      %c0_i32_44 = arith.constant 0 : i32
      %52 = arith.sitofp %c0_i32_44 : i32 to bf16
      %53 = vector.shape_cast %49 : vector<8x1xi1> to vector<8x1xi1>
      %54 = vector.broadcast %53 : vector<8x1xi1> to vector<8x32xi1>
      %55 = vector.broadcast %52 : bf16 to vector<8x32xbf16>
      %56 = arith.select %54, %51, %55 : vector<8x32xi1>, vector<8x32xbf16>
      %c0_45 = arith.constant 0 : index
      %c0_46 = arith.constant 0 : index
      %57 = vector.load %arg7[%c0_45, %c0_46] : memref<32x32xbf16, #tpu.memory_space<vmem>>, vector<8x32xbf16>
      tpu.vector_store %arg7[%c0_45, %c0_46], %56 {strides = array<i32>} : memref<32x32xbf16, #tpu.memory_space<vmem>>, vector<8x32xbf16>,
      %58 = tpu.iota {dimensions = array<i32: 0>} : vector<16x1xi32>
      %59 = vector.broadcast %0 : i32 to vector<16x1xi32>
      %60 = arith.addi %59, %58 : vector<16x1xi32>
      %c0_i32_47 = arith.constant 0 : i32
      %61 = vector.broadcast %c0_i32_47 : i32 to vector<16x1xi32>
      %62 = arith.cmpi sge, %60, %61 : vector<16x1xi32>
      %c16_i32_48 = arith.constant 16 : i32
      %63 = vector.broadcast %c16_i32_48 : i32 to vector<16x1xi32>
      %64 = arith.cmpi slt, %60, %63 : vector<16x1xi32>
      %65 = arith.andi %62, %64 : vector<16x1xi1>
      %c0_49 = arith.constant 0 : index
      %c0_50 = arith.constant 0 : index
      %c0_51 = arith.constant 0 : index
      %66 = vector.load %arg2[%c0_49, %c0_50, %c0_51] : memref<1x16x32xbf16, #tpu.memory_space<vmem>>, vector<1x16x32xbf16>
      %67 = vector.shape_cast %66 : vector<1x16x32xbf16> to vector<16x32xbf16>
      %c0_i32_52 = arith.constant 0 : i32
      %68 = arith.sitofp %c0_i32_52 : i32 to bf16
      %69 = vector.shape_cast %65 : vector<16x1xi1> to vector<16x1xi1>
      %70 = vector.broadcast %69 : vector<16x1xi1> to vector<16x32xi1>
      %71 = vector.broadcast %68 : bf16 to vector<16x32xbf16>
      %72 = arith.select %70, %67, %71 : vector<16x32xi1>, vector<16x32xbf16>
      %c8_53 = arith.constant 8 : index
      %c0_54 = arith.constant 0 : index
      %73 = vector.load %arg7[%c8_53, %c0_54] : memref<32x32xbf16, #tpu.memory_space<vmem>>, vector<16x32xbf16>
      tpu.vector_store %arg7[%c8_53, %c0_54], %72 {strides = array<i32>} : memref<32x32xbf16, #tpu.memory_space<vmem>>, vector<16x32xbf16>,
      %c16_i32_55 = arith.constant 16 : i32
      %74 = arith.addi %0, %c16_i32_55 : i32
      %75 = tpu.iota {dimensions = array<i32: 0>} : vector<8x1xi32>
      %76 = vector.broadcast %74 : i32 to vector<8x1xi32>
      %77 = arith.addi %76, %75 : vector<8x1xi32>
      %c0_i32_56 = arith.constant 0 : i32
      %78 = vector.broadcast %c0_i32_56 : i32 to vector<8x1xi32>
      %79 = arith.cmpi sge, %77, %78 : vector<8x1xi32>
      %c16_i32_57 = arith.constant 16 : i32
      %80 = vector.broadcast %c16_i32_57 : i32 to vector<8x1xi32>
      %81 = arith.cmpi slt, %77, %80 : vector<8x1xi32>
      %82 = arith.andi %79, %81 : vector<8x1xi1>
      %c0_58 = arith.constant 0 : index
      %c0_59 = arith.constant 0 : index
      %c0_60 = arith.constant 0 : index
      %83 = vector.load %arg4[%c0_58, %c0_59, %c0_60] : memref<1x8x32xbf16, #tpu.memory_space<vmem>>, vector<1x8x32xbf16>
      %84 = vector.shape_cast %83 : vector<1x8x32xbf16> to vector<8x32xbf16>
      %c0_i32_61 = arith.constant 0 : i32
      %85 = arith.sitofp %c0_i32_61 : i32 to bf16
      %86 = vector.shape_cast %82 : vector<8x1xi1> to vector<8x1xi1>
      %87 = vector.broadcast %86 : vector<8x1xi1> to vector<8x32xi1>
      %88 = vector.broadcast %85 : bf16 to vector<8x32xbf16>
      %89 = arith.select %87, %84, %88 : vector<8x32xi1>, vector<8x32xbf16>
      %c24 = arith.constant 24 : index
      %c0_62 = arith.constant 0 : index
      %90 = vector.load %arg7[%c24, %c0_62] : memref<32x32xbf16, #tpu.memory_space<vmem>>, vector<8x32xbf16>
      tpu.vector_store %arg7[%c24, %c0_62], %89 {strides = array<i32>} : memref<32x32xbf16, #tpu.memory_space<vmem>>, vector<8x32xbf16>,
    } else {
    }
    %c6 = arith.constant 6 : index
    %c0 = arith.constant 0 : index
    %11 = vector.load %arg7[%c6, %c0] : memref<32x32xbf16, #tpu.memory_space<vmem>>, vector<16x32xbf16>
    %c0_4 = arith.constant 0 : index
    %c0_5 = arith.constant 0 : index
    %c0_6 = arith.constant 0 : index
    %12 = vector.load %arg5[%c0_4, %c0_5, %c0_6] : memref<4x32x128xbf16, #tpu.memory_space<vmem>>, vector<1x32x128xbf16>
    %13 = vector.shape_cast %12 : vector<1x32x128xbf16> to vector<32x128xbf16>
    %cst = arith.constant dense<0.000000e+00> : vector<16x128xf32>
    %14 = tpu.matmul %11, %13, %cst {dimension_numbers = #tpu.dot_dimension_numbers<[1], [0], [0], [1], [0, 0, 1, 1], [], []>} : vector<16x32xbf16>, vector<32x128xbf16>, vector<16x128xf32> -> vector<16x128xf32>
    %c0_7 = arith.constant 0 : index
    %c0_8 = arith.constant 0 : index
    %15 = vector.load %arg8[%c0_7, %c0_8] : memref<16x128xf32, #tpu.memory_space<vmem>>, vector<16x128xf32>
    tpu.vector_store %arg8[%c0_7, %c0_8], %14 {strides = array<i32>} : memref<16x128xf32, #tpu.memory_space<vmem>>, vector<16x128xf32>,
    %c0_9 = arith.constant 0 : index
    %c0_10 = arith.constant 0 : index
    %16 = vector.load %arg8[%c0_9, %c0_10] : memref<16x128xf32, #tpu.memory_space<vmem>>, vector<16x128xf32>
    %c7 = arith.constant 7 : index
    %c0_11 = arith.constant 0 : index
    %17 = vector.load %arg7[%c7, %c0_11] : memref<32x32xbf16, #tpu.memory_space<vmem>>, vector<16x32xbf16>
    %c1 = arith.constant 1 : index
    %c0_12 = arith.constant 0 : index
    %c0_13 = arith.constant 0 : index
    %18 = vector.load %arg5[%c1, %c0_12, %c0_13] : memref<4x32x128xbf16, #tpu.memory_space<vmem>>, vector<1x32x128xbf16>
    %19 = vector.shape_cast %18 : vector<1x32x128xbf16> to vector<32x128xbf16>
    %cst_14 = arith.constant dense<0.000000e+00> : vector<16x128xf32>
    %20 = tpu.matmul %17, %19, %cst_14 {dimension_numbers = #tpu.dot_dimension_numbers<[1], [0], [0], [1], [0, 0, 1, 1], [], []>} : vector<16x32xbf16>, vector<32x128xbf16>, vector<16x128xf32> -> vector<16x128xf32>
    %21 = arith.addf %16, %20 : vector<16x128xf32>
    %c0_15 = arith.constant 0 : index
    %c0_16 = arith.constant 0 : index
    %22 = vector.load %arg8[%c0_15, %c0_16] : memref<16x128xf32, #tpu.memory_space<vmem>>, vector<16x128xf32>
    tpu.vector_store %arg8[%c0_15, %c0_16], %21 {strides = array<i32>} : memref<16x128xf32, #tpu.memory_space<vmem>>, vector<16x128xf32>,
    %c0_17 = arith.constant 0 : index
    %c0_18 = arith.constant 0 : index
    %23 = vector.load %arg8[%c0_17, %c0_18] : memref<16x128xf32, #tpu.memory_space<vmem>>, vector<16x128xf32>
    %c8 = arith.constant 8 : index
    %c0_19 = arith.constant 0 : index
    %24 = vector.load %arg7[%c8, %c0_19] : memref<32x32xbf16, #tpu.memory_space<vmem>>, vector<16x32xbf16>
    %c2 = arith.constant 2 : index
    %c0_20 = arith.constant 0 : index
    %c0_21 = arith.constant 0 : index
    %25 = vector.load %arg5[%c2, %c0_20, %c0_21] : memref<4x32x128xbf16, #tpu.memory_space<vmem>>, vector<1x32x128xbf16>
    %26 = vector.shape_cast %25 : vector<1x32x128xbf16> to vector<32x128xbf16>
    %cst_22 = arith.constant dense<0.000000e+00> : vector<16x128xf32>
    %27 = tpu.matmul %24, %26, %cst_22 {dimension_numbers = #tpu.dot_dimension_numbers<[1], [0], [0], [1], [0, 0, 1, 1], [], []>} : vector<16x32xbf16>, vector<32x128xbf16>, vector<16x128xf32> -> vector<16x128xf32>
    %28 = arith.addf %23, %27 : vector<16x128xf32>
    %c0_23 = arith.constant 0 : index
    %c0_24 = arith.constant 0 : index
    %29 = vector.load %arg8[%c0_23, %c0_24] : memref<16x128xf32, #tpu.memory_space<vmem>>, vector<16x128xf32>
    tpu.vector_store %arg8[%c0_23, %c0_24], %28 {strides = array<i32>} : memref<16x128xf32, #tpu.memory_space<vmem>>, vector<16x128xf32>,
    %c0_25 = arith.constant 0 : index
    %c0_26 = arith.constant 0 : index
    %30 = vector.load %arg8[%c0_25, %c0_26] : memref<16x128xf32, #tpu.memory_space<vmem>>, vector<16x128xf32>
    %c9 = arith.constant 9 : index
    %c0_27 = arith.constant 0 : index
    %31 = vector.load %arg7[%c9, %c0_27] : memref<32x32xbf16, #tpu.memory_space<vmem>>, vector<16x32xbf16>
    %c3 = arith.constant 3 : index
    %c0_28 = arith.constant 0 : index
    %c0_29 = arith.constant 0 : index
    %32 = vector.load %arg5[%c3, %c0_28, %c0_29] : memref<4x32x128xbf16, #tpu.memory_space<vmem>>, vector<1x32x128xbf16>
    %33 = vector.shape_cast %32 : vector<1x32x128xbf16> to vector<32x128xbf16>
    %cst_30 = arith.constant dense<0.000000e+00> : vector<16x128xf32>
    %34 = tpu.matmul %31, %33, %cst_30 {dimension_numbers = #tpu.dot_dimension_numbers<[1], [0], [0], [1], [0, 0, 1, 1], [], []>} : vector<16x32xbf16>, vector<32x128xbf16>, vector<16x128xf32> -> vector<16x128xf32>
    %35 = arith.addf %30, %34 : vector<16x128xf32>
    %c0_31 = arith.constant 0 : index
    %c0_32 = arith.constant 0 : index
    %36 = vector.load %arg8[%c0_31, %c0_32] : memref<16x128xf32, #tpu.memory_space<vmem>>, vector<16x128xf32>
    tpu.vector_store %arg8[%c0_31, %c0_32], %35 {strides = array<i32>} : memref<16x128xf32, #tpu.memory_space<vmem>>, vector<16x128xf32>,
    %c0_33 = arith.constant 0 : index
    %c0_34 = arith.constant 0 : index
    %37 = vector.load %arg8[%c0_33, %c0_34] : memref<16x128xf32, #tpu.memory_space<vmem>>, vector<16x128xf32>
    %c0_35 = arith.constant 0 : index
    %c0_36 = arith.constant 0 : index
    %c0_37 = arith.constant 0 : index
    %38 = vector.load %arg6[%c0_35, %c0_36, %c0_37] : memref<1x16x128xf32, #tpu.memory_space<vmem>>, vector<1x16x128xf32>
    %39 = vector.shape_cast %38 : vector<1x16x128xf32> to vector<16x128xf32>
    %40 = vector.shape_cast %37 : vector<16x128xf32> to vector<1x16x128xf32>
    tpu.vector_store %arg6[%c0_35, %c0_36, %c0_37], %40 {strides = array<i32>} : memref<1x16x128xf32, #tpu.memory_space<vmem>>, vector<1x16x128xf32>,
    return
  }
  func.func @transform_0(%arg0: i32, %arg1: i32) -> (i32, i32, i32) {
    %c0_i32 = arith.constant 0 : i32
    %0 = arith.minsi %arg1, %c0_i32 : i32
    %c0_i32_0 = arith.constant 0 : i32
    %c0_i32_1 = arith.constant 0 : i32
    return %arg0, %0, %c0_i32_0 : i32, i32, i32
  }
  func.func @transform_1(%arg0: i32, %arg1: i32) -> (i32, i32, i32) {
    %c2_i32 = arith.constant 2 : i32
    %0 = arith.muli %arg1, %c2_i32 : i32
    %c1_i32 = arith.constant 1 : i32
    %1 = arith.subi %0, %c1_i32 : i32
    %c0_i32 = arith.constant 0 : i32
    %2 = arith.maxsi %1, %c0_i32 : i32
    %c0_i32_0 = arith.constant 0 : i32
    %c0_i32_1 = arith.constant 0 : i32
    return %arg0, %2, %c0_i32_0 : i32, i32, i32
  }
  func.func @transform_2(%arg0: i32, %arg1: i32) -> (i32, i32, i32) {
    %c1_i32 = arith.constant 1 : i32
    %0 = arith.addi %arg1, %c1_i32 : i32
    %c2_i32 = arith.constant 2 : i32
    %1 = arith.muli %0, %c2_i32 : i32
    %c1_i32_0 = arith.constant 1 : i32
    %2 = arith.minsi %1, %c1_i32_0 : i32
    %c0_i32 = arith.constant 0 : i32
    %c0_i32_1 = arith.constant 0 : i32
    return %arg0, %2, %c0_i32 : i32, i32, i32
  }
  func.func @transform_3(%arg0: i32, %arg1: i32) -> (i32, i32, i32) {
    %c0_i32 = arith.constant 0 : i32
    %c0_i32_0 = arith.constant 0 : i32
    %c0_i32_1 = arith.constant 0 : i32
    %c0_i32_2 = arith.constant 0 : i32
    return %c0_i32, %c0_i32_0, %c0_i32_1 : i32, i32, i32
  }
  func.func @transform_4(%arg0: i32, %arg1: i32) -> (i32, i32, i32) {
    %c0_i32 = arith.constant 0 : i32
    %c0_i32_0 = arith.constant 0 : i32
    return %arg0, %arg1, %c0_i32 : i32, i32, i32
  }
}

</mosaic_0001>

<llo_original>
// kernel: tpu_custom_call.1
$region0: #{tpu_custom_call.1}
  #allocation0 [shape = 'u32[]', space=smem, size = 0x4, offset = 0x4, fixed_abs, tag = 'smem constant byte address 0x4 - core index']
  #allocation1 [shape = 'u32[144,128]{1,0:T(1,128)}', space=vmem, size = 0x12000, scoped, tag = 'internal scratch']
  #allocation2 [shape = 'bf16[32,32]{1,0:T(8,128)(2,1)}', space=vmem, size = 0x2000, scoped, tag = 'scratch operand']
  #allocation3 [shape = 'f32[16,128]{1,0:T(8,128)}', space=vmem, size = 0x2000, scoped, tag = 'scratch operand']
  %s0 = inlined_call_operand.hbm [shape: bf16[2,16,32], index: 0, kind: input, shape index: {}]
  %s1 = inlined_call_operand.hbm [shape: bf16[2,16,32], index: 1, kind: input, shape index: {}]
  %s2 = inlined_call_operand.hbm [shape: bf16[2,16,32], index: 2, kind: input, shape index: {}]
  %s3 = inlined_call_operand.hbm [shape: bf16[4,32,128], index: 3, kind: input, shape index: {}]
  %s4 = inlined_call_operand.vmem [shape: f32[2,17,128], index: 4, kind: output, shape index: {}]
  %s5 = sld [smem:[#allocation0]]
  $region121: #{tpu_custom_call.1} parent=0
    _
  %s7 = ssub.s32 1, %s5
  %s8 = scalar_select 0, %s7, %s5
  $region1: #{tpu_custom_call.1} parent=0
    #allocation4 [shape = 'u8[8192]{0}', space=vmem, size = 0x2000, scoped, tag = 'input window, operand 0']
    #allocation5 [shape = 's32[2]{0}', space=sflag, size = 0x8, scoped, tag = 'scoped memory for tpu_custom_call.1']
    #allocation6 [shape = 'u8[4096]{0}', space=vmem, size = 0x1000, scoped, tag = 'input window, operand 1']
    #allocation7 [shape = 's32[2]{0}', space=sflag, size = 0x8, scoped, tag = 'scoped memory for tpu_custom_call.1']
    #allocation8 [shape = 'u8[4096]{0}', space=vmem, size = 0x1000, scoped, tag = 'input window, operand 2']
    #allocation9 [shape = 'u8[32768]{0}', space=vmem, size = 0x8000, scoped, tag = 'input window, operand 3, single buffered']
    #allocation10 [shape = 's32[1]{0}', space=sflag, size = 0x4, scoped, tag = 'scoped memory for tpu_custom_call.1']
    #allocation11 [shape = 'u8[16384]{0}', space=vmem, size = 0x4000, scoped, tag = 'output window, operand 0']
    %9 = vsyncpa [#allocation5], 0
    %s10 = scalar_lea.sflag [#allocation5], 1
    %11 = vsyncpa %s10, 0
    %12 = vsyncpa [#allocation7], 0
    %s13 = scalar_lea.sflag [#allocation7], 1
    %14 = vsyncpa %s13, 0
    %15 = vsyncpa [#allocation10], 0
    loop: start=0, step=1, limit=6
    $region2: #{tpu_custom_call.1} parent=1 // loop_pre_header
      _
    $region3: #{tpu_custom_call.1} parent=1 // loop_header
      %s17 = sphi 0, %s21
      %p18 = scmp.ge.s32.totalorder %s17, 6
      %s24 = sphi 0, %s36
      %s25 = sphi 0, %s32
      %s26 = sphi 0, %s24
      %s27 = sphi 0, %s25
      %s28 = sphi 0, %s26
      %s29 = sphi 0, %s27
      %s45 = sphi 0, %s47
      %s48 = sphi 0, %s45
      %s49 = sphi 0, %s48
      %s65 = sphi 0, %s49
      %s81 = sphi 0, %s83
      %s84 = sphi 0, %s81
      %s85 = sphi 0, %s84
      %s101 = sphi 0, %s85
      %s117 = sphi 0, %s119
      %s120 = sphi 0, %s117
      %s121 = sphi 0, %s120
      %s137 = sphi 0, %s121
      %s141 = sphi 0, %s141
      %s143 = sphi 0, %s141
      %s144 = sphi 0, %s143
      %s158 = sphi 0, %s144
      %s166 = sphi 0, %s168
      %s169 = sphi 0, %s166
      %s170 = sphi 0, %s169
      %s186 = sphi 0, %s170
    $region4: #{tpu_custom_call.1} parent=1 // loop_header_branch
      %20 = sbr.rel (%p18) target = $region8
    $region5: #{tpu_custom_call.1} parent=1 // loop_body
      %s22 = ssub.s32 %s17, 1
      %s23 = ssub.s32 %s17, 2
      %s30 = sadd.s32 1, %s25
      %p31 = scmp.ge.s32.totalorder %s30, 2
      %s32 = scalar_select %p31, 0, %s30
      %s33 = sadd.s32 1, %s24
      %s34 = scalar_select %p31, %s33, %s24
      %p35 = scmp.ge.s32.totalorder %s34, 2
      %s36 = scalar_select %p35, 0, %s34
      %p37 = scmp.lt.s32.totalorder %s25, 0
      %s38 = scalar_select %p37, %s25, 0
      %p39 = scmp.lt.s32.totalorder %s32, 0
      %s40 = scalar_select %p39, %s32, 0
      %s41 = ssub.s32 %s24, %s36
      %s42 = ssub.s32 %s38, %s40
      %s43 = sor.u32 %s41, %s42
      %p44 = scmp.eq.s32.totalorder %s43, 0
      %s46 = sadd.s32 %s45, 1
      %s47 = scalar_select %p44, %s45, %s46
      %p50 = pneg %p44
      %p51 = scmp.eq.s32.totalorder %s17, 3
      %p52 = por %p50, %p51
      %p53 = scmp.ne.s32.totalorder %s45, %s48
      %p54 = scmp.eq.s32.totalorder %s17, 0
      %p55 = por %p53, %p54
      %p56 = scmp.ne.s32.totalorder %s45, %s48
      %p57 = scmp.eq.s32.totalorder %s22, 3
      %p58 = por %p56, %p57
      %p59 = scmp.ne.s32.totalorder %s48, %s49
      %p60 = scmp.eq.s32.totalorder %s22, 0
      %p61 = por %p59, %p60
      %p62 = scmp.ne.s32.totalorder %s48, %s49
      %p63 = scmp.eq.s32.totalorder %s23, 3
      %p64 = por %p62, %p63
      %p66 = scmp.ne.s32.totalorder %s49, %s65
      %p67 = scmp.eq.s32.totalorder %s23, 0
      %p68 = por %p66, %p67
      %s69 = smul.u32 %s25, 2
      %s70 = ssub.s32 %s69, 1
      %p71 = scmp.gt.s32.totalorder %s70, 0
      %s72 = scalar_select %p71, %s70, 0
      %s73 = smul.u32 %s32, 2
      %s74 = ssub.s32 %s73, 1
      %p75 = scmp.gt.s32.totalorder %s74, 0
      %s76 = scalar_select %p75, %s74, 0
      %s77 = ssub.s32 %s24, %s36
      %s78 = ssub.s32 %s72, %s76
      %s79 = sor.u32 %s77, %s78
      %p80 = scmp.eq.s32.totalorder %s79, 0
      %s82 = sadd.s32 %s81, 1
      %s83 = scalar_select %p80, %s81, %s82
      %p86 = pneg %p80
      %p87 = scmp.eq.s32.totalorder %s17, 3
      %p88 = por %p86, %p87
      %p89 = scmp.ne.s32.totalorder %s81, %s84
      %p90 = scmp.eq.s32.totalorder %s17, 0
      %p91 = por %p89, %p90
      %p92 = scmp.ne.s32.totalorder %s81, %s84
      %p93 = scmp.eq.s32.totalorder %s22, 3
      %p94 = por %p92, %p93
      %p95 = scmp.ne.s32.totalorder %s84, %s85
      %p96 = scmp.eq.s32.totalorder %s22, 0
      %p97 = por %p95, %p96
      %p98 = scmp.ne.s32.totalorder %s84, %s85
      %p99 = scmp.eq.s32.totalorder %s23, 3
      %p100 = por %p98, %p99
      %p102 = scmp.ne.s32.totalorder %s85, %s101
      %p103 = scmp.eq.s32.totalorder %s23, 0
      %p104 = por %p102, %p103
      %s105 = sadd.s32 %s25, 1
      %s106 = smul.u32 %s105, 2
      %p107 = scmp.lt.s32.totalorder %s106, 1
      %s108 = scalar_select %p107, %s106, 1
      %s109 = sadd.s32 %s32, 1
      %s110 = smul.u32 %s109, 2
      %p111 = scmp.lt.s32.totalorder %s110, 1
      %s112 = scalar_select %p111, %s110, 1
      %s113 = ssub.s32 %s24, %s36
      %s114 = ssub.s32 %s108, %s112
      %s115 = sor.u32 %s113, %s114
      %p116 = scmp.eq.s32.totalorder %s115, 0
      %s118 = sadd.s32 %s117, 1
      %s119 = scalar_select %p116, %s117, %s118
      %p122 = pneg %p116
      %p123 = scmp.eq.s32.totalorder %s17, 3
      %p124 = por %p122, %p123
      %p125 = scmp.ne.s32.totalorder %s117, %s120
      %p126 = scmp.eq.s32.totalorder %s17, 0
      %p127 = por %p125, %p126
      %p128 = scmp.ne.s32.totalorder %s117, %s120
      %p129 = scmp.eq.s32.totalorder %s22, 3
      %p130 = por %p128, %p129
      %p131 = scmp.ne.s32.totalorder %s120, %s121
      %p132 = scmp.eq.s32.totalorder %s22, 0
      %p133 = por %p131, %p132
      %p134 = scmp.ne.s32.totalorder %s120, %s121
      %p135 = scmp.eq.s32.totalorder %s23, 3
      %p136 = por %p134, %p135
      %p138 = scmp.ne.s32.totalorder %s121, %s137
      %p139 = scmp.eq.s32.totalorder %s23, 0
      %p140 = por %p138, %p139
      %s142 = sadd.s32 %s141, 1
      %p145 = scmp.eq.s32.totalorder %s17, 3
      %p146 = scmp.ne.s32.totalorder %s141, %s143
      %p147 = scmp.eq.s32.totalorder %s17, 0
      %p148 = por %p146, %p147
      %p149 = scmp.ne.s32.totalorder %s141, %s143
      %p150 = scmp.eq.s32.totalorder %s22, 3
      %p151 = por %p149, %p150
      %p152 = scmp.ne.s32.totalorder %s143, %s144
      %p153 = scmp.eq.s32.totalorder %s22, 0
      %p154 = por %p152, %p153
      %p155 = scmp.ne.s32.totalorder %s143, %s144
      %p156 = scmp.eq.s32.totalorder %s23, 3
      %p157 = por %p155, %p156
      %p159 = scmp.ne.s32.totalorder %s144, %s158
      %p160 = scmp.eq.s32.totalorder %s23, 0
      %p161 = por %p159, %p160
      %s162 = ssub.s32 %s24, %s36
      %s163 = ssub.s32 %s25, %s32
      %s164 = sor.u32 %s162, %s163
      %p165 = scmp.eq.s32.totalorder %s164, 0
      %s167 = sadd.s32 %s166, 1
      %s168 = scalar_select %p165, %s166, %s167
      %p171 = pneg %p165
      %p172 = scmp.eq.s32.totalorder %s17, 3
      %p173 = por %p171, %p172
      %p174 = scmp.ne.s32.totalorder %s166, %s169
      %p175 = scmp.eq.s32.totalorder %s17, 0
      %p176 = por %p174, %p175
      %p177 = scmp.ne.s32.totalorder %s166, %s169
      %p178 = scmp.eq.s32.totalorder %s22, 3
      %p179 = por %p177, %p178
      %p180 = scmp.ne.s32.totalorder %s169, %s170
      %p181 = scmp.eq.s32.totalorder %s22, 0
      %p182 = por %p180, %p181
      %p183 = scmp.ne.s32.totalorder %s169, %s170
      %p184 = scmp.eq.s32.totalorder %s23, 3
      %p185 = por %p183, %p184
      %p187 = scmp.ne.s32.totalorder %s170, %s186
      %p188 = scmp.eq.s32.totalorder %s23, 0
      %p189 = por %p187, %p188
      %p190 = scmp.le.s32.totalorder 1, %s17
      %p191 = scmp.lt.s32.totalorder %s17, 5
      %p192 = pnand %p190, %p191
      %p193 = pneg %p192
      // Predicated region
      $region9: #{tpu_custom_call.1} parent=5 // pred_check
        _
      $region10: #{tpu_custom_call.1} parent=5 // pred_check_branch
        %195 = sbr.rel (%p192) target = $region12
      $region11: #{tpu_custom_call.1} parent=5 // pred_region
        %s196 = ssub.s32 %s17, 1
        // Predicated region
        $region13: #{tpu_custom_call.1} parent=11 // pred_check
          %p197 = pneg %p154
        $region14: #{tpu_custom_call.1} parent=11 // pred_check_branch
          %199 = sbr.rel (%p197) target = $region16
        $region15: #{tpu_custom_call.1} parent=11 // pred_region
          %s201 = ssub.s32 1024, 1024
          %202 = vsyncadd [#allocation10], %s201
          %s203 = sshll.u32 [#allocation9], 4
          %s204 = int_to_ptr.vmem [resolvable:$true] %s203
          %209 = dma.hbm_to_vmem [thread:$0]  %s3, 1024, %s204, [#allocation10], 64, 64, 4
        $region16: #{tpu_custom_call.1} parent=11 // pred_fallthru
          _
      $region12: #{tpu_custom_call.1} parent=5 // pred_fallthru
        _
      %p210 = scmp.lt.s32.totalorder %s17, 4
      // Predicated region
      $region17: #{tpu_custom_call.1} parent=5 // pred_check
        %p211 = pneg %p210
      $region18: #{tpu_custom_call.1} parent=5 // pred_check_branch
        %213 = sbr.rel (%p211) target = $region20
      $region19: #{tpu_custom_call.1} parent=5 // pred_region
        // Predicated region
        $region21: #{tpu_custom_call.1} parent=19 // pred_check
          %p214 = pneg %p55
        $region22: #{tpu_custom_call.1} parent=19 // pred_check_branch
          %216 = sbr.rel (%p214) target = $region24
        $region23: #{tpu_custom_call.1} parent=19 // pred_region
          %s217 = sand.u32 %s45, 1
          %s218 = scalar_lea.sflag [#allocation5], %s217
          %s219 = sand.u32 %s45, 1
          %s220 = smul.addr %s219, 8
          %s221 = scalar_lea.vmem [#allocation4], %s220
          %p222 = scmp.lt.s32.totalorder %s25, 0
          %s223 = scalar_select %p222, %s25, 0
          %s224 = smul.u32 2, %s223
          %s226 = ssub.s32 128, 128
          %227 = vsyncadd %s218, %s226
          %s228 = smul.addr %s24, 2
          %s229 = sadd.s32 %s224, %s228
          %s230 = smul.addr %s229, 64
          %s231 = scalar_lea.hbm %s0, %s230
          %s232 = sshll.u32 %s221, 4
          %s233 = int_to_ptr.vmem [resolvable:$true] %s232
          %238 = dma.hbm_to_vmem [thread:$0]  %s231, 128, %s233, %s218, 64, 64, 4
        $region24: #{tpu_custom_call.1} parent=19 // pred_fallthru
          _
        // Predicated region
        $region25: #{tpu_custom_call.1} parent=19 // pred_check
          %p239 = pneg %p91
        $region26: #{tpu_custom_call.1} parent=19 // pred_check_branch
          %241 = sbr.rel (%p239) target = $region28
        $region27: #{tpu_custom_call.1} parent=19 // pred_region
          %s242 = sand.u32 %s17, 1
          %s243 = scalar_lea.sflag [#allocation7], %s242
          %s244 = sand.u32 %s81, 1
          %s245 = smul.addr %s244, 4
          %s246 = scalar_lea.vmem [#allocation6], %s245
          %s247 = smul.u32 %s25, 2
          %s248 = ssub.s32 %s247, 1
          %p249 = scmp.gt.s32.totalorder %s248, 0
          %s250 = scalar_select %p249, %s248, 0
          %s252 = ssub.s32 64, 64
          %253 = vsyncadd %s243, %s252
          %s254 = smul.addr %s24, 2
          %s255 = sadd.s32 %s250, %s254
          %s256 = smul.addr %s255, 64
          %s257 = scalar_lea.hbm %s1, %s256
          %s259 = sshll.u32 %s246, 4
          %s260 = int_to_ptr.vmem [resolvable:$true] %s259
          %262 = dma.hbm_to_vmem [thread:$0]  %s257, 64, %s260, %s243
        $region28: #{tpu_custom_call.1} parent=19 // pred_fallthru
          _
        // Predicated region
        $region29: #{tpu_custom_call.1} parent=19 // pred_check
          %p263 = pneg %p127
        $region30: #{tpu_custom_call.1} parent=19 // pred_check_branch
          %265 = sbr.rel (%p263) target = $region32
        $region31: #{tpu_custom_call.1} parent=19 // pred_region
          %s266 = sand.u32 %s17, 1
          %s267 = scalar_lea.sflag [#allocation7], %s266
          %s268 = sand.u32 %s117, 1
          %s269 = smul.addr %s268, 4
          %s270 = scalar_lea.vmem [#allocation8], %s269
          %s271 = sadd.s32 %s25, 1
          %s272 = smul.u32 %s271, 2
          %p273 = scmp.lt.s32.totalorder %s272, 1
          %s274 = scalar_select %p273, %s272, 1
          %s276 = ssub.s32 64, 64
          %277 = vsyncadd %s267, %s276
          %s278 = smul.addr %s24, 2
          %s279 = sadd.s32 %s274, %s278
          %s280 = smul.addr %s279, 64
          %s281 = scalar_lea.hbm %s2, %s280
          %s283 = sshll.u32 %s270, 4
          %s284 = int_to_ptr.vmem [resolvable:$true] %s283
          %286 = dma.hbm_to_vmem [thread:$0]  %s281, 64, %s284, %s267
        $region32: #{tpu_custom_call.1} parent=19 // pred_fallthru
          _
      $region20: #{tpu_custom_call.1} parent=5 // pred_fallthru
        _
      %p287 = scmp.le.s32.totalorder 1, %s17
      %p288 = scmp.lt.s32.totalorder %s17, 5
      %p289 = pnand %p287, %p288
      %p290 = pneg %p289
      // Predicated region
      $region33: #{tpu_custom_call.1} parent=5 // pred_check
        _
      $region34: #{tpu_custom_call.1} parent=5 // pred_check_branch
        %292 = sbr.rel (%p289) target = $region36
      $region35: #{tpu_custom_call.1} parent=5 // pred_region
        %s293 = ssub.s32 %s17, 1
        %s294 = sand.u32 %s48, 1
        %s295 = scalar_lea.sflag [#allocation5], %s294
        %s296 = sand.u32 %s48, 1
        %s297 = smul.addr %s296, 8
        %s298 = scalar_lea.vmem [#allocation4], %s297
        // Predicated region
        $region37: #{tpu_custom_call.1} parent=35 // pred_check
          %p299 = pneg %p61
        $region38: #{tpu_custom_call.1} parent=35 // pred_check_branch
          %301 = sbr.rel (%p299) target = $region40
        $region39: #{tpu_custom_call.1} parent=35 // pred_region
          %302 = dma.done %s295, 128
        $region40: #{tpu_custom_call.1} parent=35 // pred_fallthru
          _
        %s303 = sand.u32 %s22, 1
        %s304 = scalar_lea.sflag [#allocation7], %s303
        %s305 = sand.u32 %s84, 1
        %s306 = smul.addr %s305, 4
        %s307 = scalar_lea.vmem [#allocation6], %s306
        // Predicated region
        $region41: #{tpu_custom_call.1} parent=35 // pred_check
          %p308 = pneg %p97
        $region42: #{tpu_custom_call.1} parent=35 // pred_check_branch
          %310 = sbr.rel (%p308) target = $region44
        $region43: #{tpu_custom_call.1} parent=35 // pred_region
          %311 = dma.done %s304, 64
        $region44: #{tpu_custom_call.1} parent=35 // pred_fallthru
          _
        %s312 = sand.u32 %s22, 1
        %s313 = scalar_lea.sflag [#allocation7], %s312
        %s314 = sand.u32 %s120, 1
        %s315 = smul.addr %s314, 4
        %s316 = scalar_lea.vmem [#allocation8], %s315
        // Predicated region
        $region45: #{tpu_custom_call.1} parent=35 // pred_check
          %p317 = pneg %p133
        $region46: #{tpu_custom_call.1} parent=35 // pred_check_branch
          %319 = sbr.rel (%p317) target = $region48
        $region47: #{tpu_custom_call.1} parent=35 // pred_region
          %320 = dma.done %s313, 64
        $region48: #{tpu_custom_call.1} parent=35 // pred_fallthru
          _
        // Predicated region
        $region49: #{tpu_custom_call.1} parent=35 // pred_check
          %p321 = pneg %p154
        $region50: #{tpu_custom_call.1} parent=35 // pred_check_branch
          %323 = sbr.rel (%p321) target = $region52
        $region51: #{tpu_custom_call.1} parent=35 // pred_region
          %324 = dma.done [#allocation10], 1024
        $region52: #{tpu_custom_call.1} parent=35 // pred_fallthru
          _
        %s325 = sand.u32 %s48, 1
        %s326 = scalar_lea.sflag [#allocation5], %s325
        %s327 = sand.u32 %s48, 1
        %s328 = smul.addr %s327, 8
        %s329 = scalar_lea.vmem [#allocation4], %s328
        %p330 = pneg %p61
        %p331 = pneg %p58
        %s332 = sand.u32 %s22, 1
        %s333 = scalar_lea.sflag [#allocation7], %s332
        %s334 = sand.u32 %s84, 1
        %s335 = smul.addr %s334, 4
        %s336 = scalar_lea.vmem [#allocation6], %s335
        %p337 = pneg %p97
        %p338 = pneg %p94
        %s339 = sand.u32 %s22, 1
        %s340 = scalar_lea.sflag [#allocation7], %s339
        %s341 = sand.u32 %s120, 1
        %s342 = smul.addr %s341, 4
        %s343 = scalar_lea.vmem [#allocation8], %s342
        %p344 = pneg %p133
        %p345 = pneg %p130
        %p346 = pneg %p154
        %p347 = pneg %p151
        %p348 = pneg %p182
        %p349 = pneg %p179
        %s350 = sand.u32 %s169, 1
        %s351 = sand.u32 %s169, 1
        %s352 = smul.addr %s351, 16
        %s353 = scalar_lea.vmem [#allocation11], %s352
        %p354 = scmp.lt.s32.totalorder %s27, 0
        %s355 = scalar_select %p354, %s27, 0
        %s356 = smul.u32 2, %s355
        %s357 = smul.u32 %s27, 2
        %s358 = ssub.s32 %s357, 1
        %p359 = scmp.gt.s32.totalorder %s358, 0
        %s360 = scalar_select %p359, %s358, 0
        %s361 = sadd.s32 %s27, 1
        %s362 = smul.u32 %s361, 2
        %p363 = scmp.lt.s32.totalorder %s362, 1
        %s364 = scalar_select %p363, %s362, 1
        %s365 = smul.u32 2, %s27
        %s366 = ssub.s32 3, %s365
        %p367 = scmp.lt.s32.totalorder %s366, 2
        %s368 = scalar_select %p367, %s366, 2
        %s369 = smul.u32 128, %s368
        %s371 = smul.u32 %s27, 16
        %p372 = scmp.gt.s32.totalorder %s27, 0
        %s373 = sadd.s32 %s371, 24
        %p374 = scmp.le.s32.totalorder %s373, 16
        %p375 = pnand %p372, %p374
        %p376 = pneg %p375
        // Predicated region
        $region53: #{tpu_custom_call.1} parent=35 // pred_check
          _
        $region54: #{tpu_custom_call.1} parent=35 // pred_check_branch
          %378 = sbr.rel (%p375) target = $region56
        $region55: #{tpu_custom_call.1} parent=35 // pred_region
          %v379 = vld [vmem:[%s307] sm:$0xf]
          %vm380 = vcmask 257024
          %381 = vst.msk [vmem:[#allocation2] sm:$0xf] %vm380, %v379
          %v382 = vld [vmem:[%s298] sm:$0xf]
          %v383 = vld [vmem:[%s298 + $0x4] sm:$0xf]
          %384 = vst.msk [vmem:[#allocation2 + $0x4] sm:$0xf] %vm380, %v382
          %385 = vst.msk [vmem:[#allocation2 + $0x8] sm:$0xf] %vm380, %v383
          %v386 = vld [vmem:[%s316] sm:$0xf]
          %387 = vst.msk [vmem:[#allocation2 + $0xc] sm:$0xf] %vm380, %v386
        $region56: #{tpu_custom_call.1} parent=35 // pred_fallthru
          _
        %p388 = pneg %p376
        // Predicated region
        $region57: #{tpu_custom_call.1} parent=35 // pred_check
          _
        $region58: #{tpu_custom_call.1} parent=35 // pred_check_branch
          %390 = sbr.rel (%p376) target = $region60
        $region59: #{tpu_custom_call.1} parent=35 // pred_region
          %s391 = ssub.s32 %s371, 8
          %v392 = vlaneseq
          %v393 = vshrl.u32 %v392, 7
          %v394 = vstv %s391
          %v395 = vadd.s32 %v394, %v393
          %vm396 = vcmp.ge.s32.totalorder %v395, 0
          %vm397 = vcmp.lt.s32.totalorder %v395, 16
          %vm398 = vmand %vm396, %vm397
          %v399 = vld [vmem:[%s307] sm:$0xf]
          %v400 = vsel %vm398, 1, 0
          %vm401 = vcmp.eq.s32.totalorder %v400, 1
          %vm402 = vmpackc.low %vm401, %vm401
          %v403 = vsel %vm402, %v399, 0
          %vm404 = vcmask 257024
          %405 = vst.msk [vmem:[#allocation2] sm:$0xf] %vm404, %v403
          %v406 = vadd.s32 %v393, 8
          %v407 = vstv %s371
          %v408 = vadd.s32 %v407, %v393
          %v409 = vadd.s32 %v407, %v406
          %vm410 = vcmp.ge.s32.totalorder %v408, 0
          %vm411 = vcmp.ge.s32.totalorder %v409, 0
          %vm412 = vcmp.lt.s32.totalorder %v408, 16
          %vm413 = vcmp.lt.s32.totalorder %v409, 16
          %vm414 = vmand %vm410, %vm412
          %vm415 = vmand %vm411, %vm413
          %v416 = vld [vmem:[%s298] sm:$0xf]
          %v417 = vld [vmem:[%s298 + $0x4] sm:$0xf]
          %v418 = vsel %vm414, 1, 0
          %v419 = vsel %vm415, 1, 0
          %vm420 = vcmp.eq.s32.totalorder %v418, 1
          %vm421 = vcmp.eq.s32.totalorder %v419, 1
          %vm422 = vmpackc.low %vm420, %vm420
          %vm423 = vmpackc.low %vm421, %vm421
          %v424 = vsel %vm422, %v416, 0
          %v425 = vsel %vm423, %v417, 0
          %426 = vst.msk [vmem:[#allocation2 + $0x4] sm:$0xf] %vm404, %v424
          %427 = vst.msk [vmem:[#allocation2 + $0x8] sm:$0xf] %vm404, %v425
          %s428 = sadd.s32 %s371, 16
          %v429 = vstv %s428
          %v430 = vadd.s32 %v429, %v393
          %vm431 = vcmp.ge.s32.totalorder %v430, 0
          %vm432 = vcmp.lt.s32.totalorder %v430, 16
          %vm433 = vmand %vm431, %vm432
          %v434 = vld [vmem:[%s316] sm:$0xf]
          %v435 = vsel %vm433, 1, 0
          %vm436 = vcmp.eq.s32.totalorder %v435, 1
          %vm437 = vmpackc.low %vm436, %vm436
          %v438 = vsel %vm437, %v434, 0
          %439 = vst.msk [vmem:[#allocation2 + $0xc] sm:$0xf] %vm404, %v438
        $region60: #{tpu_custom_call.1} parent=35 // pred_fallthru
          _
        %v440 = vld [vmem:[#allocation2] sm:$0x8]
        %v441 = vld [vmem:[#allocation2 + $0x4] sm:$0xf]
        %v442 = vld [vmem:[#allocation2 + $0x8] sm:$0x7]
        %v443 = vld [vmem:[#allocation9] sm:$0xf]
        %v444 = vld [vmem:[#allocation9 + $0x4] sm:$0xf]
        %v445 = vld [vmem:[#allocation9 + $0x8] sm:$0xf]
        %v446 = vld [vmem:[#allocation9 + $0xc] sm:$0xf]
        %v450 = vunpack.c.l.b16 %v440
        %v451 = vunpack.c.l.b16 %v441
        %v452 = vunpack.c.l.b16 %v442
        %v453 = vpack.c.b16 %v451, %v450
        %v454 = vpack.c.b16 %v452, %v452
        %vm455 = vcmask 1044480
        %v456 = vrot.slane %v453, 3
        %v457 = vrot.slane %v454, 3
        %v458 = vsel %vm455, %v456, %v457
        %v463 = vunpack.c.l.b16 %v443
        %v464 = vunpack.c.l.b16 %v444
        %v465 = vunpack.c.l.b16 %v445
        %v466 = vunpack.c.l.b16 %v446
        %v467 = vpack.c.b16 %v464, %v463
        %v468 = vpack.c.b16 %v466, %v465
        %vm471 = vcmask 261120
        %v473 = vsel %vm471, %v458, 0
        %475 = vmatprep.subr.bf16.mxu0 0
        %476 = vmatpush1.bf16.msra.mxu0 0
        %477 = vmatprep.subr.bf16.mxu0 0
        %478 = vmatpush1.bf16.msra.mxu0 0
        %479 = vmatprep.subr.bf16.mxu0 0
        %480 = vmatpush1.bf16.msra.mxu0 0
        %481 = vmatprep.subr.bf16.mxu0 0
        %482 = vmatpush1.bf16.msra.mxu0 0
        %483 = vmatprep.subr.bf16.mxu0 0
        %484 = vmatpush1.bf16.msra.mxu0 0
        %485 = vmatprep.subr.bf16.mxu0 0
        %486 = vmatpush1.bf16.msra.mxu0 0
        %487 = vmatprep.subr.bf16.mxu0 0
        %488 = vmatpush1.bf16.msra.mxu0 %v468
        %489 = vmatprep.subr.bf16.mxu0 0
        %490 = vmatpush1.bf16.msra.mxu0 %v467
        %491 = vmatprep.subr.bf16.mxu0 0
        %492 = vmatpush2.bf16.msra.mxu0 0
        %493 = vmatprep.subr.bf16.mxu0 0
        %494 = vmatpush2.bf16.msra.mxu0 0
        %495 = vmatprep.subr.bf16.mxu0 0
        %496 = vmatpush2.bf16.msra.mxu0 0
        %497 = vmatprep.subr.bf16.mxu0 0
        %498 = vmatpush2.bf16.msra.mxu0 0
        %499 = vmatprep.subr.bf16.mxu0 0
        %500 = vmatpush2.bf16.msra.mxu0 0
        %501 = vmatprep.subr.bf16.mxu0 0
        %502 = vmatpush2.bf16.msra.mxu0 0
        %503 = vmatprep.subr.bf16.mxu0 0
        %504 = vmatpush2.bf16.msra.mxu0 0
        %505 = vmatprep.subr.bf16.mxu0 0
        %506 = vmatpush2.bf16.msra.mxu0 0
        %507 = vmatprep.mubr.bf16.mxu0 0
        %508 = vmatmul.mubr.bf16.gmra.mxu0 %v473
        %v509 = vpop.f32.mrf.mxu0
        %v510 = vadd.f32 0.0, %v509
        %v511 = vpop.f32.mrf.mxu0
        %v512 = vpop.f32.mrf.mxu0
        %v513 = vadd.f32 0.0, %v512
        %v514 = vpop.f32.mrf.mxu0
        %515 = vdwg.mxu0
        %516 = vst [vmem:[#allocation3] sm:$0xff] %v510
        %517 = vst [vmem:[#allocation3 + $0x8] sm:$0xff] %v513
        %v518 = vld [vmem:[#allocation3] sm:$0xff]
        %v519 = vld [vmem:[#allocation3 + $0x8] sm:$0xff]
        %v520 = vld [vmem:[#allocation2] sm:$0x8]
        %v521 = vld [vmem:[#allocation2 + $0x4] sm:$0xf]
        %v522 = vld [vmem:[#allocation2 + $0x8] sm:$0xf]
        %s523 = scalar_lea.vmem [#allocation9], 16
        %v524 = vld [vmem:[%s523] sm:$0xf]
        %v525 = vld [vmem:[%s523 + $0x4] sm:$0xf]
        %v526 = vld [vmem:[%s523 + $0x8] sm:$0xf]
        %v527 = vld [vmem:[%s523 + $0xc] sm:$0xf]
        %v531 = vunpack.c.l.b16 %v520
        %v532 = vunpack.c.l.b16 %v521
        %v533 = vunpack.c.l.b16 %v522
        %v534 = vpack.c.b16 %v532, %v531
        %v535 = vpack.c.b16 %v533, %v533
        %vm536 = vsmask.f32 4352
        %v538 = vshrl.u32 %v534, 16
        %v540 = vrot.slane %v538, 3
        %v541 = vshll.u32 %v534, 16
        %v543 = vrot.slane %v541, 4
        %v544 = vor.u32 %v540, %v543
        %v546 = vshrl.u32 %v535, 16
        %v548 = vrot.slane %v546, 3
        %v549 = vshll.u32 %v535, 16
        %v551 = vrot.slane %v549, 4
        %v552 = vor.u32 %v548, %v551
        %v553 = vsel %vm536, %v544, %v552
        %v558 = vunpack.c.l.b16 %v524
        %v559 = vunpack.c.l.b16 %v525
        %v560 = vunpack.c.l.b16 %v526
        %v561 = vunpack.c.l.b16 %v527
        %v562 = vpack.c.b16 %v559, %v558
        %v563 = vpack.c.b16 %v561, %v560
        %v567 = vsel %vm471, %v553, 0
        %569 = vmatprep.subr.bf16.mxu0 0
        %570 = vmatpush1.bf16.msra.mxu0 0
        %571 = vmatprep.subr.bf16.mxu0 0
        %572 = vmatpush1.bf16.msra.mxu0 0
        %573 = vmatprep.subr.bf16.mxu0 0
        %574 = vmatpush1.bf16.msra.mxu0 0
        %575 = vmatprep.subr.bf16.mxu0 0
        %576 = vmatpush1.bf16.msra.mxu0 0
        %577 = vmatprep.subr.bf16.mxu0 0
        %578 = vmatpush1.bf16.msra.mxu0 0
        %579 = vmatprep.subr.bf16.mxu0 0
        %580 = vmatpush1.bf16.msra.mxu0 0
        %581 = vmatprep.subr.bf16.mxu0 0
        %582 = vmatpush1.bf16.msra.mxu0 %v563
        %583 = vmatprep.subr.bf16.mxu0 0
        %584 = vmatpush1.bf16.msra.mxu0 %v562
        %585 = vmatprep.subr.bf16.mxu0 0
        %586 = vmatpush2.bf16.msra.mxu0 0
        %587 = vmatprep.subr.bf16.mxu0 0
        %588 = vmatpush2.bf16.msra.mxu0 0
        %589 = vmatprep.subr.bf16.mxu0 0
        %590 = vmatpush2.bf16.msra.mxu0 0
        %591 = vmatprep.subr.bf16.mxu0 0
        %592 = vmatpush2.bf16.msra.mxu0 0
        %593 = vmatprep.subr.bf16.mxu0 0
        %594 = vmatpush2.bf16.msra.mxu0 0
        %595 = vmatprep.subr.bf16.mxu0 0
        %596 = vmatpush2.bf16.msra.mxu0 0
        %597 = vmatprep.subr.bf16.mxu0 0
        %598 = vmatpush2.bf16.msra.mxu0 0
        %599 = vmatprep.subr.bf16.mxu0 0
        %600 = vmatpush2.bf16.msra.mxu0 0
        %601 = vmatprep.mubr.bf16.mxu0 0
        %602 = vmatmul.mubr.bf16.gmra.mxu0 %v567
        %v603 = vpop.f32.mrf.mxu0
        %v604 = vadd.f32 0.0, %v603
        %v605 = vpop.f32.mrf.mxu0
        %v606 = vpop.f32.mrf.mxu0
        %v607 = vadd.f32 0.0, %v606
        %v608 = vpop.f32.mrf.mxu0
        %609 = vdwg.mxu0
        %v610 = vadd.f32 %v518, %v604
        %v611 = vadd.f32 %v519, %v607
        %612 = vst [vmem:[#allocation3] sm:$0xff] %v610
        %613 = vst [vmem:[#allocation3 + $0x8] sm:$0xff] %v611
        %v614 = vld [vmem:[#allocation3] sm:$0xff]
        %v615 = vld [vmem:[#allocation3 + $0x8] sm:$0xff]
        %v616 = vld [vmem:[#allocation2 + $0x4] sm:$0xf]
        %v617 = vld [vmem:[#allocation2 + $0x8] sm:$0xf]
        %s618 = scalar_lea.vmem [#allocation9], 32
        %v619 = vld [vmem:[%s618] sm:$0xf]
        %v620 = vld [vmem:[%s618 + $0x4] sm:$0xf]
        %v621 = vld [vmem:[%s618 + $0x8] sm:$0xf]
        %v622 = vld [vmem:[%s618 + $0xc] sm:$0xf]
        %v625 = vunpack.c.l.b16 %v616
        %v626 = vunpack.c.l.b16 %v617
        %v627 = vpack.c.b16 %v626, %v625
        %v632 = vunpack.c.l.b16 %v619
        %v633 = vunpack.c.l.b16 %v620
        %v634 = vunpack.c.l.b16 %v621
        %v635 = vunpack.c.l.b16 %v622
        %v636 = vpack.c.b16 %v633, %v632
        %v637 = vpack.c.b16 %v635, %v634
        %v641 = vsel %vm471, %v627, 0
        %643 = vmatprep.subr.bf16.mxu0 0
        %644 = vmatpush1.bf16.msra.mxu0 0
        %645 = vmatprep.subr.bf16.mxu0 0
        %646 = vmatpush1.bf16.msra.mxu0 0
        %647 = vmatprep.subr.bf16.mxu0 0
        %648 = vmatpush1.bf16.msra.mxu0 0
        %649 = vmatprep.subr.bf16.mxu0 0
        %650 = vmatpush1.bf16.msra.mxu0 0
        %651 = vmatprep.subr.bf16.mxu0 0
        %652 = vmatpush1.bf16.msra.mxu0 0
        %653 = vmatprep.subr.bf16.mxu0 0
        %654 = vmatpush1.bf16.msra.mxu0 0
        %655 = vmatprep.subr.bf16.mxu0 0
        %656 = vmatpush1.bf16.msra.mxu0 %v637
        %657 = vmatprep.subr.bf16.mxu0 0
        %658 = vmatpush1.bf16.msra.mxu0 %v636
        %659 = vmatprep.subr.bf16.mxu0 0
        %660 = vmatpush2.bf16.msra.mxu0 0
        %661 = vmatprep.subr.bf16.mxu0 0
        %662 = vmatpush2.bf16.msra.mxu0 0
        %663 = vmatprep.subr.bf16.mxu0 0
        %664 = vmatpush2.bf16.msra.mxu0 0
        %665 = vmatprep.subr.bf16.mxu0 0
        %666 = vmatpush2.bf16.msra.mxu0 0
        %667 = vmatprep.subr.bf16.mxu0 0
        %668 = vmatpush2.bf16.msra.mxu0 0
        %669 = vmatprep.subr.bf16.mxu0 0
        %670 = vmatpush2.bf16.msra.mxu0 0
        %671 = vmatprep.subr.bf16.mxu0 0
        %672 = vmatpush2.bf16.msra.mxu0 0
        %673 = vmatprep.subr.bf16.mxu0 0
        %674 = vmatpush2.bf16.msra.mxu0 0
        %675 = vmatprep.mubr.bf16.mxu0 0
        %676 = vmatmul.mubr.bf16.gmra.mxu0 %v641
        %v677 = vpop.f32.mrf.mxu0
        %v678 = vadd.f32 0.0, %v677
        %v679 = vpop.f32.mrf.mxu0
        %v680 = vpop.f32.mrf.mxu0
        %v681 = vadd.f32 0.0, %v680
        %v682 = vpop.f32.mrf.mxu0
        %683 = vdwg.mxu0
        %v684 = vadd.f32 %v614, %v678
        %v685 = vadd.f32 %v615, %v681
        %686 = vst [vmem:[#allocation3] sm:$0xff] %v684
        %687 = vst [vmem:[#allocation3 + $0x8] sm:$0xff] %v685
        %v688 = vld [vmem:[#allocation3] sm:$0xff]
        %v689 = vld [vmem:[#allocation3 + $0x8] sm:$0xff]
        %v690 = vld [vmem:[#allocation2 + $0x4] sm:$0xf]
        %v691 = vld [vmem:[#allocation2 + $0x8] sm:$0xf]
        %v692 = vld [vmem:[#allocation2 + $0xc] sm:$0x1]
        %s693 = scalar_lea.vmem [#allocation9], 48
        %v694 = vld [vmem:[%s693] sm:$0xf]
        %v695 = vld [vmem:[%s693 + $0x4] sm:$0xf]
        %v696 = vld [vmem:[%s693 + $0x8] sm:$0xf]
        %v697 = vld [vmem:[%s693 + $0xc] sm:$0xf]
        %v701 = vunpack.c.l.b16 %v690
        %v702 = vunpack.c.l.b16 %v691
        %v703 = vunpack.c.l.b16 %v692
        %v704 = vpack.c.b16 %v702, %v701
        %v705 = vpack.c.b16 %v703, %v703
        %vm706 = vsmask.f32 7424
        %v708 = vshrl.u32 %v704, 16
        %v710 = vshll.u32 %v704, 16
        %v712 = vrot.slane %v710, 1
        %v713 = vor.u32 %v708, %v712
        %v715 = vshll.u32 %v705, 16
        %v717 = vrot.slane %v715, 1
        %v718 = vsel %vm706, %v713, %v717
        %v723 = vunpack.c.l.b16 %v694
        %v724 = vunpack.c.l.b16 %v695
        %v725 = vunpack.c.l.b16 %v696
        %v726 = vunpack.c.l.b16 %v697
        %v727 = vpack.c.b16 %v724, %v723
        %v728 = vpack.c.b16 %v726, %v725
        %v732 = vsel %vm471, %v718, 0
        %734 = vmatprep.subr.bf16.mxu0 0
        %735 = vmatpush1.bf16.msra.mxu0 0
        %736 = vmatprep.subr.bf16.mxu0 0
        %737 = vmatpush1.bf16.msra.mxu0 0
        %738 = vmatprep.subr.bf16.mxu0 0
        %739 = vmatpush1.bf16.msra.mxu0 0
        %740 = vmatprep.subr.bf16.mxu0 0
        %741 = vmatpush1.bf16.msra.mxu0 0
        %742 = vmatprep.subr.bf16.mxu0 0
        %743 = vmatpush1.bf16.msra.mxu0 0
        %744 = vmatprep.subr.bf16.mxu0 0
        %745 = vmatpush1.bf16.msra.mxu0 0
        %746 = vmatprep.subr.bf16.mxu0 0
        %747 = vmatpush1.bf16.msra.mxu0 %v728
        %748 = vmatprep.subr.bf16.mxu0 0
        %749 = vmatpush1.bf16.msra.mxu0 %v727
        %750 = vmatprep.subr.bf16.mxu0 0
        %751 = vmatpush2.bf16.msra.mxu0 0
        %752 = vmatprep.subr.bf16.mxu0 0
        %753 = vmatpush2.bf16.msra.mxu0 0
        %754 = vmatprep.subr.bf16.mxu0 0
        %755 = vmatpush2.bf16.msra.mxu0 0
        %756 = vmatprep.subr.bf16.mxu0 0
        %757 = vmatpush2.bf16.msra.mxu0 0
        %758 = vmatprep.subr.bf16.mxu0 0
        %759 = vmatpush2.bf16.msra.mxu0 0
        %760 = vmatprep.subr.bf16.mxu0 0
        %761 = vmatpush2.bf16.msra.mxu0 0
        %762 = vmatprep.subr.bf16.mxu0 0
        %763 = vmatpush2.bf16.msra.mxu0 0
        %764 = vmatprep.subr.bf16.mxu0 0
        %765 = vmatpush2.bf16.msra.mxu0 0
        %766 = vmatprep.mubr.bf16.mxu0 0
        %767 = vmatmul.mubr.bf16.gmra.mxu0 %v732
        %v768 = vpop.f32.mrf.mxu0
        %v769 = vadd.f32 0.0, %v768
        %v770 = vpop.f32.mrf.mxu0
        %v771 = vpop.f32.mrf.mxu0
        %v772 = vadd.f32 0.0, %v771
        %v773 = vpop.f32.mrf.mxu0
        %774 = vdwg.mxu0
        %v775 = vadd.f32 %v688, %v769
        %v776 = vadd.f32 %v689, %v772
        %777 = vst [vmem:[#allocation3] sm:$0xff] %v775
        %778 = vst [vmem:[#allocation3 + $0x8] sm:$0xff] %v776
        %v779 = vld [vmem:[#allocation3] sm:$0xff]
        %v780 = vld [vmem:[#allocation3 + $0x8] sm:$0xff]
        %781 = vst [vmem:[%s353] sm:$0xff] %v779
        %782 = vst [vmem:[%s353 + $0x8] sm:$0xff] %v780
        %s783 = sand.u32 %s169, 1
        %s784 = sand.u32 %s169, 1
        %s785 = smul.addr %s784, 16
        %s786 = scalar_lea.vmem [#allocation11], %s785
        // Predicated region
        $region61: #{tpu_custom_call.1} parent=35 // pred_check
          %p787 = pneg %p179
        $region62: #{tpu_custom_call.1} parent=35 // pred_check_branch
          %789 = sbr.rel (%p787) target = $region64
        $region63: #{tpu_custom_call.1} parent=35 // pred_region
          %s790 = smul.u32 2, %s27
          %s791 = ssub.s32 3, %s790
          %p792 = scmp.lt.s32.totalorder %s791, 2
          %s793 = scalar_select %p792, %s791, 2
          %s794 = smul.u32 128, %s793
          %p795 = scmp.ne.s32.totalorder 0, %s794
          %s796 = smul.addr %s26, 3
          %s797 = sadd.s32 %s790, %s796
          %s798 = smul.addr %s797, 8
          %s799 = scalar_lea.vmem %s4, %s798
          // Predicated region
          $region65: #{tpu_custom_call.1} parent=63 // pred_check
            %p800 = pneg %p795
          $region66: #{tpu_custom_call.1} parent=63 // pred_check_branch
            %802 = sbr.rel (%p800) target = $region68
          $region67: #{tpu_custom_call.1} parent=63 // pred_region
            // Predicated region
            $region69: #{tpu_custom_call.1} parent=67 // pred_check
              _
            $region70: #{tpu_custom_call.1} parent=67 // pred_check_branch
              %804 = sbr.rel (0) target = $region72
            $region71: #{tpu_custom_call.1} parent=67 // pred_region
              // Predicated region
              $region91: #{tpu_custom_call.1} parent=71 // pred_check
                _
              $region92: #{tpu_custom_call.1} parent=71 // pred_check_branch
                %856 = sbr.rel (0) target = $region94
              $region93: #{tpu_custom_call.1} parent=71 // pred_region
                %s857 = sshrl.u32 %s793, 1
                // While loop
                $region95: #{tpu_custom_call.1} parent=93 // loop_pre_header
                  _
                $region96: #{tpu_custom_call.1} parent=93 // loop_header
                  %s859 = sphi 0, %s861
                  %p860 = scmp.ge.s32.totalorder %s859, %s857
                  %s864 = sphi 0, %s873
                  %s865 = sphi %s786, %s876
                  %s866 = sphi %s799, %s877
                $region97: #{tpu_custom_call.1} parent=93 // loop_header_branch
                  %863 = sbr.rel (%p860) target = $region101
                $region98: #{tpu_custom_call.1} parent=93 // loop_body
                  %v867 = vld [vmem:[%s865] sm:$0xff]
                  %868 = vst [vmem:[%s866] sm:$0xff] %v867
                  %v869 = vld [vmem:[%s865 + $0x8] sm:$0xff]
                  %870 = vst [vmem:[%s866 + $0x8] sm:$0xff] %v869
                  %s871 = sadd.s32 1, %s864
                  %p872 = scmp.ge.s32.totalorder %s871, %s857
                  %s873 = scalar_select %p872, 0, %s871
                  %s874 = smul.u32 %s873, 16
                  %s875 = smul.u32 %s873, 16
                  %s876 = scalar_lea.vmem %s786, %s874 [#allocation11]
                  %s877 = scalar_lea.vmem %s799, %s875
                $region99: #{tpu_custom_call.1} parent=93 // loop_footer
                  %s861 = sadd.s32 %s859, 1
                $region100: #{tpu_custom_call.1} parent=93 // loop_footer_branch
                  %858 = sbr.rel target = $region96
                $region101: #{tpu_custom_call.1} parent=93 // loop_exit
                  _
                %s878 = sshrl.u32 %s793, 1
                %s879 = sand.u32 %s793, 1
                %s880 = smul.u32 %s878, 2
                %s881 = smul.u32 8, %s880
                %s882 = scalar_lea.vmem %s786, %s881 [#allocation11]
                %s883 = smul.u32 8, %s880
                %s884 = scalar_lea.vmem %s799, %s883
                // While loop
                $region102: #{tpu_custom_call.1} parent=93 // loop_pre_header
                  _
                $region103: #{tpu_custom_call.1} parent=93 // loop_header
                  %s886 = sphi 0, %s888
                  %p887 = scmp.ge.s32.totalorder %s886, %s879
                  %s891 = sphi 0, %s898
                  %s892 = sphi %s882, %s901
                  %s893 = sphi %s884, %s902
                $region104: #{tpu_custom_call.1} parent=93 // loop_header_branch
                  %890 = sbr.rel (%p887) target = $region108
                $region105: #{tpu_custom_call.1} parent=93 // loop_body
                  %v894 = vld [vmem:[%s892] sm:$0xff]
                  %895 = vst [vmem:[%s893] sm:$0xff] %v894
                  %s896 = sadd.s32 1, %s891
                  %p897 = scmp.ge.s32.totalorder %s896, %s879
                  %s898 = scalar_select %p897, 0, %s896
                  %s899 = smul.u32 %s898, 8
                  %s900 = smul.u32 %s898, 8
                  %s901 = scalar_lea.vmem %s882, %s899 [#allocation11]
                  %s902 = scalar_lea.vmem %s884, %s900
                $region106: #{tpu_custom_call.1} parent=93 // loop_footer
                  %s888 = sadd.s32 %s886, 1
                $region107: #{tpu_custom_call.1} parent=93 // loop_footer_branch
                  %885 = sbr.rel target = $region103
                $region108: #{tpu_custom_call.1} parent=93 // loop_exit
                  _
              $region94: #{tpu_custom_call.1} parent=71 // pred_fallthru
                _
              // Predicated region
              $region109: #{tpu_custom_call.1} parent=71 // pred_check
                _
              $region110: #{tpu_custom_call.1} parent=71 // pred_check_branch
                %904 = sbr.rel target = $region112
              $region111: #{tpu_custom_call.1} parent=71 // pred_region
                _
              $region112: #{tpu_custom_call.1} parent=71 // pred_fallthru
                _
            $region72: #{tpu_custom_call.1} parent=67 // pred_fallthru
              _
            // Predicated region
            $region73: #{tpu_custom_call.1} parent=67 // pred_check
              _
            $region74: #{tpu_custom_call.1} parent=67 // pred_check_branch
              %806 = sbr.rel target = $region76
            $region75: #{tpu_custom_call.1} parent=67 // pred_region
              %s808 = ssub.s32 256, 1
              %s809 = sshrl.u32 %s793, 1
              // While loop
              $region77: #{tpu_custom_call.1} parent=75 // loop_pre_header
                _
              $region78: #{tpu_custom_call.1} parent=75 // loop_header
                %s811 = sphi 0, %s813
                %p812 = scmp.ge.s32.totalorder %s811, %s809
                %s816 = sphi 0, %s825
                %s817 = sphi %s786, %s828
                %s818 = sphi %s799, %s829
              $region79: #{tpu_custom_call.1} parent=75 // loop_header_branch
                %815 = sbr.rel (%p812) target = $region83
              $region80: #{tpu_custom_call.1} parent=75 // loop_body
                %v819 = vld [vmem:[%s817] sm:%s808]
                %820 = vst [vmem:[%s818] sm:%s808] %v819
                %v821 = vld [vmem:[%s817 + $0x8] sm:%s808]
                %822 = vst [vmem:[%s818 + $0x8] sm:%s808] %v821
                %s823 = sadd.s32 1, %s816
                %p824 = scmp.ge.s32.totalorder %s823, %s809
                %s825 = scalar_select %p824, 0, %s823
                %s826 = smul.u32 %s825, 16
                %s827 = smul.u32 %s825, 16
                %s828 = scalar_lea.vmem %s786, %s826 [#allocation11]
                %s829 = scalar_lea.vmem %s799, %s827
              $region81: #{tpu_custom_call.1} parent=75 // loop_footer
                %s813 = sadd.s32 %s811, 1
              $region82: #{tpu_custom_call.1} parent=75 // loop_footer_branch
                %810 = sbr.rel target = $region78
              $region83: #{tpu_custom_call.1} parent=75 // loop_exit
                _
              %s830 = sshrl.u32 %s793, 1
              %s831 = sand.u32 %s793, 1
              %s832 = smul.u32 %s830, 2
              %s833 = smul.u32 8, %s832
              %s834 = scalar_lea.vmem %s786, %s833 [#allocation11]
              %s835 = smul.u32 8, %s832
              %s836 = scalar_lea.vmem %s799, %s835
              // While loop
              $region84: #{tpu_custom_call.1} parent=75 // loop_pre_header
                _
              $region85: #{tpu_custom_call.1} parent=75 // loop_header
                %s838 = sphi 0, %s840
                %p839 = scmp.ge.s32.totalorder %s838, %s831
                %s843 = sphi 0, %s850
                %s844 = sphi %s834, %s853
                %s845 = sphi %s836, %s854
              $region86: #{tpu_custom_call.1} parent=75 // loop_header_branch
                %842 = sbr.rel (%p839) target = $region90
              $region87: #{tpu_custom_call.1} parent=75 // loop_body
                %v846 = vld [vmem:[%s844] sm:%s808]
                %847 = vst [vmem:[%s845] sm:%s808] %v846
                %s848 = sadd.s32 1, %s843
                %p849 = scmp.ge.s32.totalorder %s848, %s831
                %s850 = scalar_select %p849, 0, %s848
                %s851 = smul.u32 %s850, 8
                %s852 = smul.u32 %s850, 8
                %s853 = scalar_lea.vmem %s834, %s851 [#allocation11]
                %s854 = scalar_lea.vmem %s836, %s852
              $region88: #{tpu_custom_call.1} parent=75 // loop_footer
                %s840 = sadd.s32 %s838, 1
              $region89: #{tpu_custom_call.1} parent=75 // loop_footer_branch
                %837 = sbr.rel target = $region85
              $region90: #{tpu_custom_call.1} parent=75 // loop_exit
                _
            $region76: #{tpu_custom_call.1} parent=67 // pred_fallthru
              _
          $region68: #{tpu_custom_call.1} parent=63 // pred_fallthru
            _
          %905 = vnop
        $region64: #{tpu_custom_call.1} parent=35 // pred_fallthru
          _
      $region36: #{tpu_custom_call.1} parent=5 // pred_fallthru
        _
      %p906 = scmp.le.s32.totalorder 2, %s17
      // Predicated region
      $region113: #{tpu_custom_call.1} parent=5 // pred_check
        %p907 = pneg %p906
      $region114: #{tpu_custom_call.1} parent=5 // pred_check_branch
        %909 = sbr.rel (%p907) target = $region116
      $region115: #{tpu_custom_call.1} parent=5 // pred_region
        %s910 = ssub.s32 %s17, 2
        // Predicated region
        $region117: #{tpu_custom_call.1} parent=115 // pred_check
          %p911 = pneg %p185
        $region118: #{tpu_custom_call.1} parent=115 // pred_check_branch
          %913 = sbr.rel (%p911) target = $region120
        $region119: #{tpu_custom_call.1} parent=115 // pred_region
          %s914 = sand.u32 %s170, 1
          %s915 = sand.u32 %s170, 1
          %s916 = smul.addr %s915, 16
          %s917 = scalar_lea.vmem [#allocation11], %s916
        $region120: #{tpu_custom_call.1} parent=115 // pred_fallthru
          _
      $region116: #{tpu_custom_call.1} parent=5 // pred_fallthru
        _
    $region6: #{tpu_custom_call.1} parent=1 // loop_footer
      %s21 = sadd.s32 1, %s17
    $region7: #{tpu_custom_call.1} parent=1 // loop_footer_branch
      %16 = sbr.rel target = $region3
    $region8: #{tpu_custom_call.1} parent=1 // loop_exit
      _
    %918 = vsyncpa [#allocation5], 1
    %s919 = scalar_lea.sflag [#allocation5], 1
    %920 = vsyncpa %s919, 1
    %921 = vsyncpa [#allocation7], 1
    %s922 = scalar_lea.sflag [#allocation7], 1
    %923 = vsyncpa %s922, 1
    %924 = vsyncpa [#allocation10], 1

</llo_original>
